<compile_context>
chip_gen: v7x
topology: tpu7x:2x2x1
jax: 0.10.0
libtpu: 0.0.40
codegen_flags: <defaults>
</compile_context>

<pallas_src>
import functools

import jax
import jax.numpy as jnp
from jax import lax
from jax.experimental import pallas as pl
from jax.experimental.pallas import tpu as pltpu


def _round_up(a, b):
    return (a + b - 1) // b * b


def _mlp_kernel(x_ref, g_ref, beta_ref,
                w1_ref, b1_ref, w2_ref, b2_ref, w3_ref, b3_ref,
                o_ref, *, d_actual, eps):
    # (tm, Dp) tile of tokens; LayerNorm statistics in f32.
    x = x_ref[...].astype(jnp.float32)
    dp = x.shape[1]

    # ---- LayerNorm over the (lane-padded) feature axis ----
    # Padded lanes of x are zero so the sum already covers only real features;
    # mask the centered values so padding does not pollute the variance.
    lane = lax.broadcasted_iota(jnp.int32, (1, dp), 1)
    feat_mask = lane < d_actual
    inv_d = jnp.float32(1.0 / d_actual)

    mu = jnp.sum(x, axis=-1, keepdims=True) * inv_d
    centered = jnp.where(feat_mask, x - mu, 0.0)
    var = jnp.sum(centered * centered, axis=-1, keepdims=True) * inv_d
    xn = centered * lax.rsqrt(var + eps)
    # gamma/beta are zero-padded, so padded lanes of xn remain exactly 0.
    xn = xn * g_ref[...].astype(jnp.float32) + beta_ref[...].astype(jnp.float32)

    # ---- Linear(D -> 2D) + ReLU ----
    # Matmul operands in the weight dtype (bf16 weights -> bf16 MXU pass),
    # accumulation in f32.
    h1 = jnp.dot(xn.astype(w1_ref.dtype), w1_ref[...],
                 preferred_element_type=jnp.float32)
    h1 = jnp.maximum(h1 + b1_ref[...].astype(jnp.float32), 0.0)

    # ---- Linear(2D -> D) + ReLU ----
    h2 = jnp.dot(h1.astype(w2_ref.dtype), w2_ref[...],
                 preferred_element_type=jnp.float32)
    h2 = jnp.maximum(h2 + b2_ref[...].astype(jnp.float32), 0.0)

    # ---- Linear(D -> out) ----
    out = jnp.dot(h2.astype(w3_ref.dtype), w3_ref[...],
                  preferred_element_type=jnp.float32)
    out = out + b3_ref[...].astype(jnp.float32)

    o_ref[...] = out.astype(o_ref.dtype)


def mlp_pallas(x, params, *, tm=256, eps=1e-5,
               vmem_limit_bytes=64 * 1024 * 1024):
    """x: (M, D). params: layernorm + 3 linear layers. Returns (M, out)."""
    M, D = x.shape
    H = params["w1"].shape[1]          # 2*D
    O = params["w3"].shape[1]          # out_features

    # Row-tile sublane granularity: 8 rows for 32-bit, 16 rows for 16-bit.
    row_align = 16 if jnp.dtype(x.dtype).itemsize == 2 else 8

    # Lane-pad feature dims to multiples of 128 (full vregs, unmasked stores).
    Dp, Hp, Op = (_round_up(v, 128) for v in (D, H, O))

    # Row tile: large to fill MXU rows and amortize per-grid-step overhead, but
    # keep at least 2 grid steps when possible (both v7x TensorCores get work).
    tm_eff = max(row_align,
                 min(_round_up(tm, row_align), _round_up(M, row_align)))
    if _round_up(M, tm_eff) // tm_eff < 2 and M > row_align:
        tm_eff = max(row_align, _round_up(pl.cdiv(M, 2), row_align))
    Mp = _round_up(M, tm_eff)

    def pad2(a, rows, cols):
        return jnp.pad(a, ((0, rows - a.shape[0]), (0, cols - a.shape[1])))

    xp = pad2(x, Mp, Dp)
    gamma = pad2(params["gamma"], 1, Dp)
    beta = pad2(params["beta"], 1, Dp)
    w1 = pad2(params["w1"], Dp, Hp)
    b1 = pad2(params["b1"], 1, Hp)
    w2 = pad2(params["w2"], Hp, Dp)
    b2 = pad2(params["b2"], 1, Dp)
    w3 = pad2(params["w3"], Dp, Op)
    b3 = pad2(params["b3"], 1, Op)

    grid = (Mp // tm_eff,)

    def row_tile(i):
        return (i, 0)

    def whole(i):
        return (0, 0)

    kernel = functools.partial(_mlp_kernel, d_actual=D, eps=eps)

    out_p = pl.pallas_call(
        kernel,
        out_shape=jax.ShapeDtypeStruct((Mp, Op), x.dtype),
        grid_spec=pltpu.PrefetchScalarGridSpec(
            num_scalar_prefetch=0,
            grid=grid,
            in_specs=[
                pl.BlockSpec((tm_eff, Dp), row_tile),   # x tile
                pl.BlockSpec((1, Dp), whole),           # ln gamma
                pl.BlockSpec((1, Dp), whole),           # ln beta
                pl.BlockSpec((Dp, Hp), whole),          # w1
                pl.BlockSpec((1, Hp), whole),           # b1
                pl.BlockSpec((Hp, Dp), whole),          # w2
                pl.BlockSpec((1, Dp), whole),           # b2
                pl.BlockSpec((Dp, Op), whole),          # w3
                pl.BlockSpec((1, Op), whole),           # b3
            ],
            out_specs=pl.BlockSpec((tm_eff, Op), row_tile),
        ),
        compiler_params=pltpu.CompilerParams(
            dimension_semantics=("parallel",),
            vmem_limit_bytes=vmem_limit_bytes,
        ),
    )(xp, gamma, beta, w1, b1, w2, b2, w3, b3)

    return out_p[:M, :O]


def init_params(key, in_features, out_features, dtype=jnp.float32):
    d, h, o = in_features, 2 * in_features, out_features
    k1, k2, k3 = jax.random.split(key, 3)
    scale = 0.05
    return {
        "gamma": jnp.ones((1, d), dtype),
        "beta": jnp.zeros((1, d), dtype),
        "w1": (scale * jax.random.normal(k1, (d, h))).astype(dtype),
        "b1": jnp.zeros((1, h), dtype),
        "w2": (scale * jax.random.normal(k2, (h, d))).astype(dtype),
        "b2": jnp.zeros((1, d), dtype),
        "w3": (scale * jax.random.normal(k3, (d, o))).astype(dtype),
        "b3": jnp.zeros((1, o), dtype),
    }


def mlp_reference(x, params, eps=1e-5):
    xf = x.astype(jnp.float32)
    mu = jnp.mean(xf, axis=-1, keepdims=True)
    var = jnp.mean(jnp.square(xf - mu), axis=-1, keepdims=True)
    xn = (xf - mu) * lax.rsqrt(var + eps) * params["gamma"] + params["beta"]
    h1 = jnp.maximum(xn @ params["w1"] + params["b1"], 0.0)
    h2 = jnp.maximum(h1 @ params["w2"] + params["b2"], 0.0)
    return (h2 @ params["w3"] + params["b3"]).astype(x.dtype)


if __name__ == "__main__":
    in_features, out_features = 32, 32

    key = jax.random.PRNGKey(0)
    kx, kp, kx2 = jax.random.split(key, 3)

    # ---- f32 correctness check at small shapes (batch=2, seq=8, d=32) ----
    batch, seq = 2, 8
    x3 = jax.random.normal(kx, (batch, seq, in_features), dtype=jnp.float32)
    params = init_params(kp, in_features, out_features)

    x2 = x3.reshape(batch * seq, in_features)
    out = mlp_pallas(x2, params).reshape(batch, seq, out_features)
    jax.block_until_ready(out)

    ref = mlp_reference(x2, params).reshape(batch, seq, out_features)
    assert jnp.allclose(out, ref, atol=1e-5, rtol=1e-5), "f32 mismatch vs reference"

    # ---- bf16 matmul-operand path (f32 accumulation), larger row tile ----
    batch2, seq2 = 2, 128
    xb3 = jax.random.normal(kx2, (batch2, seq2, in_features), dtype=jnp.float32)
    params_bf = {k: v.astype(jnp.bfloat16) for k, v in params.items()}
    xb2 = xb3.astype(jnp.bfloat16).reshape(batch2 * seq2, in_features)

    out_bf = mlp_pallas(xb2, params_bf)
    jax.block_until_ready(out_bf)

    ref_bf = mlp_reference(
        xb2.astype(jnp.float32),
        {k: v.astype(jnp.float32) for k, v in params_bf.items()})
    assert jnp.allclose(out_bf.astype(jnp.float32), ref_bf,
                        atol=1e-2, rtol=5e-2), "bf16 mismatch vs reference"

    print("KERNEL_OK")
</pallas_src>

<mosaic_0001>
module attributes {stable_mosaic.version = 11 : i64} {
  func.func @_mlp_kernel(%arg0: i32, %arg1: memref<8x128xf32, #tpu.memory_space<vmem>>, %arg2: memref<1x128xf32, #tpu.memory_space<vmem>>, %arg3: memref<1x128xf32, #tpu.memory_space<vmem>>, %arg4: memref<128x128xf32, #tpu.memory_space<vmem>>, %arg5: memref<1x128xf32, #tpu.memory_space<vmem>>, %arg6: memref<128x128xf32, #tpu.memory_space<vmem>>, %arg7: memref<1x128xf32, #tpu.memory_space<vmem>>, %arg8: memref<128x128xf32, #tpu.memory_space<vmem>>, %arg9: memref<1x128xf32, #tpu.memory_space<vmem>>, %arg10: memref<8x128xf32, #tpu.memory_space<vmem>>) attributes {dimension_semantics = [#tpu.dimension_semantics<parallel>], iteration_bounds = array<i64: 2>, scalar_prefetch = 0 : i64, scratch_operands = 0 : i64, tpu.core_type = #tpu.core_type<tc>, window_params = [{transform_indices = @transform_0, window_bounds = array<i64: 8, 128>}, {pipeline_mode = #tpu.pipeline_mode<synchronous>, transform_indices = @transform_1, window_bounds = array<i64: 1, 128>}, {pipeline_mode = #tpu.pipeline_mode<synchronous>, transform_indices = @transform_2, window_bounds = array<i64: 1, 128>}, {pipeline_mode = #tpu.pipeline_mode<synchronous>, transform_indices = @transform_3, window_bounds = array<i64: 128, 128>}, {pipeline_mode = #tpu.pipeline_mode<synchronous>, transform_indices = @transform_4, window_bounds = array<i64: 1, 128>}, {pipeline_mode = #tpu.pipeline_mode<synchronous>, transform_indices = @transform_5, window_bounds = array<i64: 128, 128>}, {pipeline_mode = #tpu.pipeline_mode<synchronous>, transform_indices = @transform_6, window_bounds = array<i64: 1, 128>}, {pipeline_mode = #tpu.pipeline_mode<synchronous>, transform_indices = @transform_7, window_bounds = array<i64: 128, 128>}, {pipeline_mode = #tpu.pipeline_mode<synchronous>, transform_indices = @transform_8, window_bounds = array<i64: 1, 128>}, {transform_indices = @transform_9, window_bounds = array<i64: 8, 128>}]} {
    %c0 = arith.constant 0 : index
    %c0_0 = arith.constant 0 : index
    %0 = vector.load %arg1[%c0, %c0_0] : memref<8x128xf32, #tpu.memory_space<vmem>>, vector<8x128xf32>
    %1 = tpu.iota {dimensions = array<i32: 1>} : vector<1x128xi32>
    %c32_i32 = arith.constant 32 : i32
    %2 = vector.broadcast %c32_i32 : i32 to vector<1x128xi32>
    %3 = arith.cmpi slt, %1, %2 : vector<1x128xi32>
    %cst = arith.constant dense<0.000000e+00> : vector<8xf32>
    %4 = vector.multi_reduction <add>, %0, %cst [1] : vector<8x128xf32> to vector<8xf32>
    %5 = vector.shape_cast %4 : vector<8xf32> to vector<8x1xf32>
    %cst_1 = arith.constant 3.125000e-02 : f32
    %6 = vector.broadcast %cst_1 : f32 to vector<8x1xf32>
    %7 = arith.mulf %5, %6 : vector<8x1xf32>
    %8 = vector.broadcast %7 : vector<8x1xf32> to vector<8x128xf32>
    %9 = arith.subf %0, %8 : vector<8x128xf32>
    %cst_2 = arith.constant 0.000000e+00 : f32
    %10 = vector.shape_cast %3 : vector<1x128xi1> to vector<1x128xi1>
    %11 = vector.broadcast %10 : vector<1x128xi1> to vector<8x128xi1>
    %12 = vector.broadcast %cst_2 : f32 to vector<8x128xf32>
    %13 = arith.select %11, %9, %12 : vector<8x128xi1>, vector<8x128xf32>
    %14 = arith.mulf %13, %13 : vector<8x128xf32>
    %cst_3 = arith.constant dense<0.000000e+00> : vector<8xf32>
    %15 = vector.multi_reduction <add>, %14, %cst_3 [1] : vector<8x128xf32> to vector<8xf32>
    %16 = vector.shape_cast %15 : vector<8xf32> to vector<8x1xf32>
    %cst_4 = arith.constant 3.125000e-02 : f32
    %17 = vector.broadcast %cst_4 : f32 to vector<8x1xf32>
    %18 = arith.mulf %16, %17 : vector<8x1xf32>
    %cst_5 = arith.constant 9.99999974E-6 : f32
    %19 = vector.broadcast %cst_5 : f32 to vector<8x1xf32>
    %20 = arith.addf %18, %19 : vector<8x1xf32>
    %21 = math.rsqrt %20 : vector<8x1xf32>
    %22 = vector.broadcast %21 : vector<8x1xf32> to vector<8x128xf32>
    %23 = arith.mulf %13, %22 : vector<8x128xf32>
    %c0_6 = arith.constant 0 : index
    %c0_7 = arith.constant 0 : index
    %24 = vector.load %arg2[%c0_6, %c0_7] : memref<1x128xf32, #tpu.memory_space<vmem>>, vector<1x128xf32>
    %25 = vector.broadcast %24 : vector<1x128xf32> to vector<8x128xf32>
    %26 = arith.mulf %23, %25 : vector<8x128xf32>
    %c0_8 = arith.constant 0 : index
    %c0_9 = arith.constant 0 : index
    %27 = vector.load %arg3[%c0_8, %c0_9] : memref<1x128xf32, #tpu.memory_space<vmem>>, vector<1x128xf32>
    %28 = vector.broadcast %27 : vector<1x128xf32> to vector<8x128xf32>
    %29 = arith.addf %26, %28 : vector<8x128xf32>
    %c0_10 = arith.constant 0 : index
    %c0_11 = arith.constant 0 : index
    %30 = vector.load %arg4[%c0_10, %c0_11] : memref<128x128xf32, #tpu.memory_space<vmem>>, vector<128x128xf32>
    %cst_12 = arith.constant dense<0.000000e+00> : vector<8x128xf32>
    %31 = tpu.matmul %29, %30, %cst_12 {dimension_numbers = #tpu.dot_dimension_numbers<[1], [0], [0], [1], [0, 0, 1, 1], [], []>} : vector<8x128xf32>, vector<128x128xf32>, vector<8x128xf32> -> vector<8x128xf32>
    %c0_13 = arith.constant 0 : index
    %c0_14 = arith.constant 0 : index
    %32 = vector.load %arg5[%c0_13, %c0_14] : memref<1x128xf32, #tpu.memory_space<vmem>>, vector<1x128xf32>
    %33 = vector.broadcast %32 : vector<1x128xf32> to vector<8x128xf32>
    %34 = arith.addf %31, %33 : vector<8x128xf32>
    %cst_15 = arith.constant 0.000000e+00 : f32
    %35 = vector.broadcast %cst_15 : f32 to vector<8x128xf32>
    %36 = arith.maximumf %34, %35 : vector<8x128xf32>
    %c0_16 = arith.constant 0 : index
    %c0_17 = arith.constant 0 : index
    %37 = vector.load %arg6[%c0_16, %c0_17] : memref<128x128xf32, #tpu.memory_space<vmem>>, vector<128x128xf32>
    %cst_18 = arith.constant dense<0.000000e+00> : vector<8x128xf32>
    %38 = tpu.matmul %36, %37, %cst_18 {dimension_numbers = #tpu.dot_dimension_numbers<[1], [0], [0], [1], [0, 0, 1, 1], [], []>} : vector<8x128xf32>, vector<128x128xf32>, vector<8x128xf32> -> vector<8x128xf32>
    %c0_19 = arith.constant 0 : index
    %c0_20 = arith.constant 0 : index
    %39 = vector.load %arg7[%c0_19, %c0_20] : memref<1x128xf32, #tpu.memory_space<vmem>>, vector<1x128xf32>
    %40 = vector.broadcast %39 : vector<1x128xf32> to vector<8x128xf32>
    %41 = arith.addf %38, %40 : vector<8x128xf32>
    %cst_21 = arith.constant 0.000000e+00 : f32
    %42 = vector.broadcast %cst_21 : f32 to vector<8x128xf32>
    %43 = arith.maximumf %41, %42 : vector<8x128xf32>
    %c0_22 = arith.constant 0 : index
    %c0_23 = arith.constant 0 : index
    %44 = vector.load %arg8[%c0_22, %c0_23] : memref<128x128xf32, #tpu.memory_space<vmem>>, vector<128x128xf32>
    %cst_24 = arith.constant dense<0.000000e+00> : vector<8x128xf32>
    %45 = tpu.matmul %43, %44, %cst_24 {dimension_numbers = #tpu.dot_dimension_numbers<[1], [0], [0], [1], [0, 0, 1, 1], [], []>} : vector<8x128xf32>, vector<128x128xf32>, vector<8x128xf32> -> vector<8x128xf32>
    %c0_25 = arith.constant 0 : index
    %c0_26 = arith.constant 0 : index
    %46 = vector.load %arg9[%c0_25, %c0_26] : memref<1x128xf32, #tpu.memory_space<vmem>>, vector<1x128xf32>
    %47 = vector.broadcast %46 : vector<1x128xf32> to vector<8x128xf32>
    %48 = arith.addf %45, %47 : vector<8x128xf32>
    %c0_27 = arith.constant 0 : index
    %c0_28 = arith.constant 0 : index
    %49 = vector.load %arg10[%c0_27, %c0_28] : memref<8x128xf32, #tpu.memory_space<vmem>>, vector<8x128xf32>
    tpu.vector_store %arg10[%c0_27, %c0_28], %48 {strides = array<i32>} : memref<8x128xf32, #tpu.memory_space<vmem>>, vector<8x128xf32>,
    return
  }
  func.func @transform_0(%arg0: i32) -> (i32, i32) {
    %c0_i32 = arith.constant 0 : i32
    %c0_i32_0 = arith.constant 0 : i32
    return %arg0, %c0_i32 : i32, i32
  }
  func.func @transform_1(%arg0: i32) -> (i32, i32) {
    %c0_i32 = arith.constant 0 : i32
    %c0_i32_0 = arith.constant 0 : i32
    %c0_i32_1 = arith.constant 0 : i32
    return %c0_i32, %c0_i32_0 : i32, i32
  }
  func.func @transform_2(%arg0: i32) -> (i32, i32) {
    %c0_i32 = arith.constant 0 : i32
    %c0_i32_0 = arith.constant 0 : i32
    %c0_i32_1 = arith.constant 0 : i32
    return %c0_i32, %c0_i32_0 : i32, i32
  }
  func.func @transform_3(%arg0: i32) -> (i32, i32) {
    %c0_i32 = arith.constant 0 : i32
    %c0_i32_0 = arith.constant 0 : i32
    %c0_i32_1 = arith.constant 0 : i32
    return %c0_i32, %c0_i32_0 : i32, i32
  }
  func.func @transform_4(%arg0: i32) -> (i32, i32) {
    %c0_i32 = arith.constant 0 : i32
    %c0_i32_0 = arith.constant 0 : i32
    %c0_i32_1 = arith.constant 0 : i32
    return %c0_i32, %c0_i32_0 : i32, i32
  }
  func.func @transform_5(%arg0: i32) -> (i32, i32) {
    %c0_i32 = arith.constant 0 : i32
    %c0_i32_0 = arith.constant 0 : i32
    %c0_i32_1 = arith.constant 0 : i32
    return %c0_i32, %c0_i32_0 : i32, i32
  }
  func.func @transform_6(%arg0: i32) -> (i32, i32) {
    %c0_i32 = arith.constant 0 : i32
    %c0_i32_0 = arith.constant 0 : i32
    %c0_i32_1 = arith.constant 0 : i32
    return %c0_i32, %c0_i32_0 : i32, i32
  }
  func.func @transform_7(%arg0: i32) -> (i32, i32) {
    %c0_i32 = arith.constant 0 : i32
    %c0_i32_0 = arith.constant 0 : i32
    %c0_i32_1 = arith.constant 0 : i32
    return %c0_i32, %c0_i32_0 : i32, i32
  }
  func.func @transform_8(%arg0: i32) -> (i32, i32) {
    %c0_i32 = arith.constant 0 : i32
    %c0_i32_0 = arith.constant 0 : i32
    %c0_i32_1 = arith.constant 0 : i32
    return %c0_i32, %c0_i32_0 : i32, i32
  }
  func.func @transform_9(%arg0: i32) -> (i32, i32) {
    %c0_i32 = arith.constant 0 : i32
    %c0_i32_0 = arith.constant 0 : i32
    return %arg0, %c0_i32 : i32, i32
  }
}

</mosaic_0001>

<llo_original>
// kernel: tpu_custom_call.1
$region0: #{tpu_custom_call.1}
  #allocation0 [shape = 'u32[]', space=smem, size = 0x4, offset = 0x4, fixed_abs, tag = 'smem constant byte address 0x4 - core index']
  #allocation1 [shape = 'u32[144,128]{1,0:T(1,128)}', space=vmem, size = 0x12000, scoped, tag = 'internal scratch']
  %s0 = inlined_call_operand.hbm [shape: f32[16,128], index: 0, kind: input, shape index: {}]
  %s1 = inlined_call_operand.hbm [shape: f32[1,128], index: 1, kind: input, shape index: {}]
  %s2 = inlined_call_operand.hbm [shape: f32[1,128], index: 2, kind: input, shape index: {}]
  %s3 = inlined_call_operand.hbm [shape: f32[128,128], index: 3, kind: input, shape index: {}]
  %s4 = inlined_call_operand.hbm [shape: f32[1,128], index: 4, kind: input, shape index: {}]
  %s5 = inlined_call_operand.hbm [shape: f32[128,128], index: 5, kind: input, shape index: {}]
  %s6 = inlined_call_operand.hbm [shape: f32[1,128], index: 6, kind: input, shape index: {}]
  %s7 = inlined_call_operand.hbm [shape: f32[128,128], index: 7, kind: input, shape index: {}]
  %s8 = inlined_call_operand.hbm [shape: f32[1,128], index: 8, kind: input, shape index: {}]
  %s9 = inlined_call_operand.hbm [shape: f32[16,128], index: 9, kind: output, shape index: {}]
  %s10 = sld [smem:[#allocation0]]
  $region105: #{tpu_custom_call.1} parent=0
    _
  %s12 = ssub.s32 1, %s10
  %s13 = scalar_select 0, %s12, %s10
  $region1: #{tpu_custom_call.1} parent=0
    #allocation2 [shape = 'u8[8192]{0}', space=vmem, size = 0x2000, scoped, tag = 'input window, operand 0']
    #allocation3 [shape = 's32[2]{0}', space=sflag, size = 0x8, scoped, tag = 'scoped memory for tpu_custom_call.1']
    #allocation4 [shape = 's32[2]{0}', space=sflag, size = 0x8, scoped, tag = 'scoped memory for tpu_custom_call.1']
    #allocation5 [shape = 'u8[512]{0}', space=vmem, size = 0x400, scoped, tag = 'input window, operand 1, single buffered']
    #allocation6 [shape = 's32[1]{0}', space=sflag, size = 0x4, scoped, tag = 'scoped memory for tpu_custom_call.1']
    #allocation7 [shape = 'u8[512]{0}', space=vmem, size = 0x400, scoped, tag = 'input window, operand 2, single buffered']
    #allocation8 [shape = 'u8[65536]{0}', space=vmem, size = 0x10000, scoped, tag = 'input window, operand 3, single buffered']
    #allocation9 [shape = 's32[1]{0}', space=sflag, size = 0x4, scoped, tag = 'scoped memory for tpu_custom_call.1']
    #allocation10 [shape = 'u8[512]{0}', space=vmem, size = 0x400, scoped, tag = 'input window, operand 4, single buffered']
    #allocation11 [shape = 'u8[65536]{0}', space=vmem, size = 0x10000, scoped, tag = 'input window, operand 5, single buffered']
    #allocation12 [shape = 's32[1]{0}', space=sflag, size = 0x4, scoped, tag = 'scoped memory for tpu_custom_call.1']
    #allocation13 [shape = 'u8[512]{0}', space=vmem, size = 0x400, scoped, tag = 'input window, operand 6, single buffered']
    #allocation14 [shape = 'u8[65536]{0}', space=vmem, size = 0x10000, scoped, tag = 'input window, operand 7, single buffered']
    #allocation15 [shape = 's32[1]{0}', space=sflag, size = 0x4, scoped, tag = 'scoped memory for tpu_custom_call.1']
    #allocation16 [shape = 'u8[512]{0}', space=vmem, size = 0x400, scoped, tag = 'input window, operand 8, single buffered']
    #allocation17 [shape = 'u8[8192]{0}', space=vmem, size = 0x2000, scoped, tag = 'output window, operand 0']
    %14 = vsyncpa [#allocation3], 0
    %s15 = scalar_lea.sflag [#allocation3], 1
    %16 = vsyncpa %s15, 0
    %17 = vsyncpa [#allocation6], 0
    %18 = vsyncpa [#allocation9], 0
    %19 = vsyncpa [#allocation12], 0
    %20 = vsyncpa [#allocation15], 0
    %21 = vsyncpa [#allocation4], 0
    %s22 = scalar_lea.sflag [#allocation4], 1
    %23 = vsyncpa %s22, 0
    loop: start=0, step=1, limit=4
    $region2: #{tpu_custom_call.1} parent=1 // loop_pre_header
      _
    $region3: #{tpu_custom_call.1} parent=1 // loop_header
      %s25 = sphi 0, %s29
      %p26 = scmp.ge.s32.totalorder %s25, 4
      %s35 = sphi 0, %s37
      %s38 = sphi 0, %s35
      %s39 = sphi 0, %s38
      %s55 = sphi 0, %s39
      %s59 = sphi 0, %s59
      %s61 = sphi 0, %s59
      %s62 = sphi 0, %s61
      %s76 = sphi 0, %s62
      %s80 = sphi 0, %s80
      %s82 = sphi 0, %s80
      %s83 = sphi 0, %s82
      %s97 = sphi 0, %s83
      %s101 = sphi 0, %s101
      %s103 = sphi 0, %s101
      %s104 = sphi 0, %s103
      %s118 = sphi 0, %s104
      %s122 = sphi 0, %s122
      %s124 = sphi 0, %s122
      %s125 = sphi 0, %s124
      %s139 = sphi 0, %s125
      %s143 = sphi 0, %s143
      %s145 = sphi 0, %s143
      %s146 = sphi 0, %s145
      %s160 = sphi 0, %s146
      %s164 = sphi 0, %s164
      %s166 = sphi 0, %s164
      %s167 = sphi 0, %s166
      %s181 = sphi 0, %s167
      %s185 = sphi 0, %s185
      %s187 = sphi 0, %s185
      %s188 = sphi 0, %s187
      %s202 = sphi 0, %s188
      %s206 = sphi 0, %s206
      %s208 = sphi 0, %s206
      %s209 = sphi 0, %s208
      %s223 = sphi 0, %s209
      %s229 = sphi 0, %s231
      %s232 = sphi 0, %s229
      %s233 = sphi 0, %s232
      %s249 = sphi 0, %s233
    $region4: #{tpu_custom_call.1} parent=1 // loop_header_branch
      %28 = sbr.rel (%p26) target = $region8
    $region5: #{tpu_custom_call.1} parent=1 // loop_body
      %s30 = ssub.s32 %s25, 1
      %s31 = ssub.s32 %s25, 2
      %s32 = sadd.s32 %s25, 1
      %s33 = ssub.s32 %s25, %s32
      %p34 = scmp.eq.s32.totalorder %s33, 0
      %s36 = sadd.s32 %s35, 1
      %s37 = scalar_select %p34, %s35, %s36
      %p40 = pneg %p34
      %p41 = scmp.eq.s32.totalorder %s25, 1
      %p42 = por %p40, %p41
      %p43 = scmp.ne.s32.totalorder %s35, %s38
      %p44 = scmp.eq.s32.totalorder %s25, 0
      %p45 = por %p43, %p44
      %p46 = scmp.ne.s32.totalorder %s35, %s38
      %p47 = scmp.eq.s32.totalorder %s30, 1
      %p48 = por %p46, %p47
      %p49 = scmp.ne.s32.totalorder %s38, %s39
      %p50 = scmp.eq.s32.totalorder %s30, 0
      %p51 = por %p49, %p50
      %p52 = scmp.ne.s32.totalorder %s38, %s39
      %p53 = scmp.eq.s32.totalorder %s31, 1
      %p54 = por %p52, %p53
      %p56 = scmp.ne.s32.totalorder %s39, %s55
      %p57 = scmp.eq.s32.totalorder %s31, 0
      %p58 = por %p56, %p57
      %s60 = sadd.s32 %s59, 1
      %p63 = scmp.eq.s32.totalorder %s25, 1
      %p64 = scmp.ne.s32.totalorder %s59, %s61
      %p65 = scmp.eq.s32.totalorder %s25, 0
      %p66 = por %p64, %p65
      %p67 = scmp.ne.s32.totalorder %s59, %s61
      %p68 = scmp.eq.s32.totalorder %s30, 1
      %p69 = por %p67, %p68
      %p70 = scmp.ne.s32.totalorder %s61, %s62
      %p71 = scmp.eq.s32.totalorder %s30, 0
      %p72 = por %p70, %p71
      %p73 = scmp.ne.s32.totalorder %s61, %s62
      %p74 = scmp.eq.s32.totalorder %s31, 1
      %p75 = por %p73, %p74
      %p77 = scmp.ne.s32.totalorder %s62, %s76
      %p78 = scmp.eq.s32.totalorder %s31, 0
      %p79 = por %p77, %p78
      %s81 = sadd.s32 %s80, 1
      %p84 = scmp.eq.s32.totalorder %s25, 1
      %p85 = scmp.ne.s32.totalorder %s80, %s82
      %p86 = scmp.eq.s32.totalorder %s25, 0
      %p87 = por %p85, %p86
      %p88 = scmp.ne.s32.totalorder %s80, %s82
      %p89 = scmp.eq.s32.totalorder %s30, 1
      %p90 = por %p88, %p89
      %p91 = scmp.ne.s32.totalorder %s82, %s83
      %p92 = scmp.eq.s32.totalorder %s30, 0
      %p93 = por %p91, %p92
      %p94 = scmp.ne.s32.totalorder %s82, %s83
      %p95 = scmp.eq.s32.totalorder %s31, 1
      %p96 = por %p94, %p95
      %p98 = scmp.ne.s32.totalorder %s83, %s97
      %p99 = scmp.eq.s32.totalorder %s31, 0
      %p100 = por %p98, %p99
      %s102 = sadd.s32 %s101, 1
      %p105 = scmp.eq.s32.totalorder %s25, 1
      %p106 = scmp.ne.s32.totalorder %s101, %s103
      %p107 = scmp.eq.s32.totalorder %s25, 0
      %p108 = por %p106, %p107
      %p109 = scmp.ne.s32.totalorder %s101, %s103
      %p110 = scmp.eq.s32.totalorder %s30, 1
      %p111 = por %p109, %p110
      %p112 = scmp.ne.s32.totalorder %s103, %s104
      %p113 = scmp.eq.s32.totalorder %s30, 0
      %p114 = por %p112, %p113
      %p115 = scmp.ne.s32.totalorder %s103, %s104
      %p116 = scmp.eq.s32.totalorder %s31, 1
      %p117 = por %p115, %p116
      %p119 = scmp.ne.s32.totalorder %s104, %s118
      %p120 = scmp.eq.s32.totalorder %s31, 0
      %p121 = por %p119, %p120
      %s123 = sadd.s32 %s122, 1
      %p126 = scmp.eq.s32.totalorder %s25, 1
      %p127 = scmp.ne.s32.totalorder %s122, %s124
      %p128 = scmp.eq.s32.totalorder %s25, 0
      %p129 = por %p127, %p128
      %p130 = scmp.ne.s32.totalorder %s122, %s124
      %p131 = scmp.eq.s32.totalorder %s30, 1
      %p132 = por %p130, %p131
      %p133 = scmp.ne.s32.totalorder %s124, %s125
      %p134 = scmp.eq.s32.totalorder %s30, 0
      %p135 = por %p133, %p134
      %p136 = scmp.ne.s32.totalorder %s124, %s125
      %p137 = scmp.eq.s32.totalorder %s31, 1
      %p138 = por %p136, %p137
      %p140 = scmp.ne.s32.totalorder %s125, %s139
      %p141 = scmp.eq.s32.totalorder %s31, 0
      %p142 = por %p140, %p141
      %s144 = sadd.s32 %s143, 1
      %p147 = scmp.eq.s32.totalorder %s25, 1
      %p148 = scmp.ne.s32.totalorder %s143, %s145
      %p149 = scmp.eq.s32.totalorder %s25, 0
      %p150 = por %p148, %p149
      %p151 = scmp.ne.s32.totalorder %s143, %s145
      %p152 = scmp.eq.s32.totalorder %s30, 1
      %p153 = por %p151, %p152
      %p154 = scmp.ne.s32.totalorder %s145, %s146
      %p155 = scmp.eq.s32.totalorder %s30, 0
      %p156 = por %p154, %p155
      %p157 = scmp.ne.s32.totalorder %s145, %s146
      %p158 = scmp.eq.s32.totalorder %s31, 1
      %p159 = por %p157, %p158
      %p161 = scmp.ne.s32.totalorder %s146, %s160
      %p162 = scmp.eq.s32.totalorder %s31, 0
      %p163 = por %p161, %p162
      %s165 = sadd.s32 %s164, 1
      %p168 = scmp.eq.s32.totalorder %s25, 1
      %p169 = scmp.ne.s32.totalorder %s164, %s166
      %p170 = scmp.eq.s32.totalorder %s25, 0
      %p171 = por %p169, %p170
      %p172 = scmp.ne.s32.totalorder %s164, %s166
      %p173 = scmp.eq.s32.totalorder %s30, 1
      %p174 = por %p172, %p173
      %p175 = scmp.ne.s32.totalorder %s166, %s167
      %p176 = scmp.eq.s32.totalorder %s30, 0
      %p177 = por %p175, %p176
      %p178 = scmp.ne.s32.totalorder %s166, %s167
      %p179 = scmp.eq.s32.totalorder %s31, 1
      %p180 = por %p178, %p179
      %p182 = scmp.ne.s32.totalorder %s167, %s181
      %p183 = scmp.eq.s32.totalorder %s31, 0
      %p184 = por %p182, %p183
      %s186 = sadd.s32 %s185, 1
      %p189 = scmp.eq.s32.totalorder %s25, 1
      %p190 = scmp.ne.s32.totalorder %s185, %s187
      %p191 = scmp.eq.s32.totalorder %s25, 0
      %p192 = por %p190, %p191
      %p193 = scmp.ne.s32.totalorder %s185, %s187
      %p194 = scmp.eq.s32.totalorder %s30, 1
      %p195 = por %p193, %p194
      %p196 = scmp.ne.s32.totalorder %s187, %s188
      %p197 = scmp.eq.s32.totalorder %s30, 0
      %p198 = por %p196, %p197
      %p199 = scmp.ne.s32.totalorder %s187, %s188
      %p200 = scmp.eq.s32.totalorder %s31, 1
      %p201 = por %p199, %p200
      %p203 = scmp.ne.s32.totalorder %s188, %s202
      %p204 = scmp.eq.s32.totalorder %s31, 0
      %p205 = por %p203, %p204
      %s207 = sadd.s32 %s206, 1
      %p210 = scmp.eq.s32.totalorder %s25, 1
      %p211 = scmp.ne.s32.totalorder %s206, %s208
      %p212 = scmp.eq.s32.totalorder %s25, 0
      %p213 = por %p211, %p212
      %p214 = scmp.ne.s32.totalorder %s206, %s208
      %p215 = scmp.eq.s32.totalorder %s30, 1
      %p216 = por %p214, %p215
      %p217 = scmp.ne.s32.totalorder %s208, %s209
      %p218 = scmp.eq.s32.totalorder %s30, 0
      %p219 = por %p217, %p218
      %p220 = scmp.ne.s32.totalorder %s208, %s209
      %p221 = scmp.eq.s32.totalorder %s31, 1
      %p222 = por %p220, %p221
      %p224 = scmp.ne.s32.totalorder %s209, %s223
      %p225 = scmp.eq.s32.totalorder %s31, 0
      %p226 = por %p224, %p225
      %s227 = ssub.s32 %s25, %s32
      %p228 = scmp.eq.s32.totalorder %s227, 0
      %s230 = sadd.s32 %s229, 1
      %s231 = scalar_select %p228, %s229, %s230
      %p234 = pneg %p228
      %p235 = scmp.eq.s32.totalorder %s25, 1
      %p236 = por %p234, %p235
      %p237 = scmp.ne.s32.totalorder %s229, %s232
      %p238 = scmp.eq.s32.totalorder %s25, 0
      %p239 = por %p237, %p238
      %p240 = scmp.ne.s32.totalorder %s229, %s232
      %p241 = scmp.eq.s32.totalorder %s30, 1
      %p242 = por %p240, %p241
      %p243 = scmp.ne.s32.totalorder %s232, %s233
      %p244 = scmp.eq.s32.totalorder %s30, 0
      %p245 = por %p243, %p244
      %p246 = scmp.ne.s32.totalorder %s232, %s233
      %p247 = scmp.eq.s32.totalorder %s31, 1
      %p248 = por %p246, %p247
      %p250 = scmp.ne.s32.totalorder %s233, %s249
      %p251 = scmp.eq.s32.totalorder %s31, 0
      %p252 = por %p250, %p251
      %p253 = scmp.le.s32.totalorder 1, %s25
      %p254 = scmp.lt.s32.totalorder %s25, 3
      %p255 = pnand %p253, %p254
      %p256 = pneg %p255
      // Predicated region
      $region9: #{tpu_custom_call.1} parent=5 // pred_check
        _
      $region10: #{tpu_custom_call.1} parent=5 // pred_check_branch
        %258 = sbr.rel (%p255) target = $region12
      $region11: #{tpu_custom_call.1} parent=5 // pred_region
        %s259 = ssub.s32 %s25, 1
        // Predicated region
        $region13: #{tpu_custom_call.1} parent=11 // pred_check
          %p260 = pneg %p72
        $region14: #{tpu_custom_call.1} parent=11 // pred_check_branch
          %262 = sbr.rel (%p260) target = $region16
        $region15: #{tpu_custom_call.1} parent=11 // pred_region
          %s264 = ssub.s32 16, 16
          %265 = vsyncadd [#allocation6], %s264
          %s267 = sshll.u32 [#allocation5], 4
          %s268 = int_to_ptr.vmem [resolvable:$true] %s267
          %270 = dma.hbm_to_vmem [thread:$0]  %s1, 16, %s268, [#allocation6]
        $region16: #{tpu_custom_call.1} parent=11 // pred_fallthru
          _
        // Predicated region
        $region17: #{tpu_custom_call.1} parent=11 // pred_check
          %p271 = pneg %p93
        $region18: #{tpu_custom_call.1} parent=11 // pred_check_branch
          %273 = sbr.rel (%p271) target = $region20
        $region19: #{tpu_custom_call.1} parent=11 // pred_region
          %s275 = ssub.s32 16, 16
          %276 = vsyncadd [#allocation6], %s275
          %s278 = sshll.u32 [#allocation7], 4
          %s279 = int_to_ptr.vmem [resolvable:$true] %s278
          %281 = dma.hbm_to_vmem [thread:$0]  %s2, 16, %s279, [#allocation6]
        $region20: #{tpu_custom_call.1} parent=11 // pred_fallthru
          _
        // Predicated region
        $region21: #{tpu_custom_call.1} parent=11 // pred_check
          %p282 = pneg %p114
        $region22: #{tpu_custom_call.1} parent=11 // pred_check_branch
          %284 = sbr.rel (%p282) target = $region24
        $region23: #{tpu_custom_call.1} parent=11 // pred_region
          %s286 = ssub.s32 2048, 2048
          %287 = vsyncadd [#allocation9], %s286
          %s288 = sshll.u32 [#allocation8], 4
          %s289 = int_to_ptr.vmem [resolvable:$true] %s288
          %294 = dma.hbm_to_vmem [thread:$0]  %s3, 2048, %s289, [#allocation9], 128, 128, 8
        $region24: #{tpu_custom_call.1} parent=11 // pred_fallthru
          _
        // Predicated region
        $region25: #{tpu_custom_call.1} parent=11 // pred_check
          %p295 = pneg %p135
        $region26: #{tpu_custom_call.1} parent=11 // pred_check_branch
          %297 = sbr.rel (%p295) target = $region28
        $region27: #{tpu_custom_call.1} parent=11 // pred_region
          %s299 = ssub.s32 16, 16
          %300 = vsyncadd [#allocation9], %s299
          %s302 = sshll.u32 [#allocation10], 4
          %s303 = int_to_ptr.vmem [resolvable:$true] %s302
          %305 = dma.hbm_to_vmem [thread:$0]  %s4, 16, %s303, [#allocation9]
        $region28: #{tpu_custom_call.1} parent=11 // pred_fallthru
          _
        // Predicated region
        $region29: #{tpu_custom_call.1} parent=11 // pred_check
          %p306 = pneg %p156
        $region30: #{tpu_custom_call.1} parent=11 // pred_check_branch
          %308 = sbr.rel (%p306) target = $region32
        $region31: #{tpu_custom_call.1} parent=11 // pred_region
          %s310 = ssub.s32 2048, 2048
          %311 = vsyncadd [#allocation12], %s310
          %s312 = sshll.u32 [#allocation11], 4
          %s313 = int_to_ptr.vmem [resolvable:$true] %s312
          %318 = dma.hbm_to_vmem [thread:$0]  %s5, 2048, %s313, [#allocation12], 128, 128, 8
        $region32: #{tpu_custom_call.1} parent=11 // pred_fallthru
          _
        // Predicated region
        $region33: #{tpu_custom_call.1} parent=11 // pred_check
          %p319 = pneg %p177
        $region34: #{tpu_custom_call.1} parent=11 // pred_check_branch
          %321 = sbr.rel (%p319) target = $region36
        $region35: #{tpu_custom_call.1} parent=11 // pred_region
          %s323 = ssub.s32 16, 16
          %324 = vsyncadd [#allocation12], %s323
          %s326 = sshll.u32 [#allocation13], 4
          %s327 = int_to_ptr.vmem [resolvable:$true] %s326
          %329 = dma.hbm_to_vmem [thread:$0]  %s6, 16, %s327, [#allocation12]
        $region36: #{tpu_custom_call.1} parent=11 // pred_fallthru
          _
        // Predicated region
        $region37: #{tpu_custom_call.1} parent=11 // pred_check
          %p330 = pneg %p198
        $region38: #{tpu_custom_call.1} parent=11 // pred_check_branch
          %332 = sbr.rel (%p330) target = $region40
        $region39: #{tpu_custom_call.1} parent=11 // pred_region
          %s334 = ssub.s32 2048, 2048
          %335 = vsyncadd [#allocation15], %s334
          %s336 = sshll.u32 [#allocation14], 4
          %s337 = int_to_ptr.vmem [resolvable:$true] %s336
          %342 = dma.hbm_to_vmem [thread:$0]  %s7, 2048, %s337, [#allocation15], 128, 128, 8
        $region40: #{tpu_custom_call.1} parent=11 // pred_fallthru
          _
        // Predicated region
        $region41: #{tpu_custom_call.1} parent=11 // pred_check
          %p343 = pneg %p219
        $region42: #{tpu_custom_call.1} parent=11 // pred_check_branch
          %345 = sbr.rel (%p343) target = $region44
        $region43: #{tpu_custom_call.1} parent=11 // pred_region
          %s347 = ssub.s32 16, 16
          %348 = vsyncadd [#allocation15], %s347
          %s350 = sshll.u32 [#allocation16], 4
          %s351 = int_to_ptr.vmem [resolvable:$true] %s350
          %353 = dma.hbm_to_vmem [thread:$0]  %s8, 16, %s351, [#allocation15]
        $region44: #{tpu_custom_call.1} parent=11 // pred_fallthru
          _
      $region12: #{tpu_custom_call.1} parent=5 // pred_fallthru
        _
      %p354 = scmp.lt.s32.totalorder %s25, 2
      // Predicated region
      $region45: #{tpu_custom_call.1} parent=5 // pred_check
        %p355 = pneg %p354
      $region46: #{tpu_custom_call.1} parent=5 // pred_check_branch
        %357 = sbr.rel (%p355) target = $region48
      $region47: #{tpu_custom_call.1} parent=5 // pred_region
        // Predicated region
        $region49: #{tpu_custom_call.1} parent=47 // pred_check
          %p358 = pneg %p45
        $region50: #{tpu_custom_call.1} parent=47 // pred_check_branch
          %360 = sbr.rel (%p358) target = $region52
        $region51: #{tpu_custom_call.1} parent=47 // pred_region
          %s361 = sand.u32 %s35, 1
          %s362 = scalar_lea.sflag [#allocation3], %s361
          %s363 = sand.u32 %s35, 1
          %s364 = smul.addr %s363, 8
          %s365 = scalar_lea.vmem [#allocation2], %s364
          %s367 = ssub.s32 128, 128
          %368 = vsyncadd %s362, %s367
          %s369 = smul.addr %s25, 128
          %s370 = scalar_lea.hbm %s0, %s369
          %s372 = sshll.u32 %s365, 4
          %s373 = int_to_ptr.vmem [resolvable:$true] %s372
          %375 = dma.hbm_to_vmem [thread:$0]  %s370, 128, %s373, %s362
        $region52: #{tpu_custom_call.1} parent=47 // pred_fallthru
          _
      $region48: #{tpu_custom_call.1} parent=5 // pred_fallthru
        _
      %p376 = scmp.le.s32.totalorder 1, %s25
      %p377 = scmp.lt.s32.totalorder %s25, 3
      %p378 = pnand %p376, %p377
      %p379 = pneg %p378
      // Predicated region
      $region53: #{tpu_custom_call.1} parent=5 // pred_check
        _
      $region54: #{tpu_custom_call.1} parent=5 // pred_check_branch
        %381 = sbr.rel (%p378) target = $region56
      $region55: #{tpu_custom_call.1} parent=5 // pred_region
        %s382 = ssub.s32 %s25, 1
        %s383 = sand.u32 %s38, 1
        %s384 = scalar_lea.sflag [#allocation3], %s383
        %s385 = sand.u32 %s38, 1
        %s386 = smul.addr %s385, 8
        %s387 = scalar_lea.vmem [#allocation2], %s386
        // Predicated region
        $region57: #{tpu_custom_call.1} parent=55 // pred_check
          %p388 = pneg %p51
        $region58: #{tpu_custom_call.1} parent=55 // pred_check_branch
          %390 = sbr.rel (%p388) target = $region60
        $region59: #{tpu_custom_call.1} parent=55 // pred_region
          %391 = dma.done %s384, 128
        $region60: #{tpu_custom_call.1} parent=55 // pred_fallthru
          _
        // Predicated region
        $region61: #{tpu_custom_call.1} parent=55 // pred_check
          %p392 = pneg %p72
        $region62: #{tpu_custom_call.1} parent=55 // pred_check_branch
          %394 = sbr.rel (%p392) target = $region64
        $region63: #{tpu_custom_call.1} parent=55 // pred_region
          %395 = dma.done [#allocation6], 16
        $region64: #{tpu_custom_call.1} parent=55 // pred_fallthru
          _
        // Predicated region
        $region65: #{tpu_custom_call.1} parent=55 // pred_check
          %p396 = pneg %p93
        $region66: #{tpu_custom_call.1} parent=55 // pred_check_branch
          %398 = sbr.rel (%p396) target = $region68
        $region67: #{tpu_custom_call.1} parent=55 // pred_region
          %399 = dma.done [#allocation6], 16
        $region68: #{tpu_custom_call.1} parent=55 // pred_fallthru
          _
        // Predicated region
        $region69: #{tpu_custom_call.1} parent=55 // pred_check
          %p400 = pneg %p114
        $region70: #{tpu_custom_call.1} parent=55 // pred_check_branch
          %402 = sbr.rel (%p400) target = $region72
        $region71: #{tpu_custom_call.1} parent=55 // pred_region
          %403 = dma.done [#allocation9], 2048
        $region72: #{tpu_custom_call.1} parent=55 // pred_fallthru
          _
        // Predicated region
        $region73: #{tpu_custom_call.1} parent=55 // pred_check
          %p404 = pneg %p135
        $region74: #{tpu_custom_call.1} parent=55 // pred_check_branch
          %406 = sbr.rel (%p404) target = $region76
        $region75: #{tpu_custom_call.1} parent=55 // pred_region
          %407 = dma.done [#allocation9], 16
        $region76: #{tpu_custom_call.1} parent=55 // pred_fallthru
          _
        // Predicated region
        $region77: #{tpu_custom_call.1} parent=55 // pred_check
          %p408 = pneg %p156
        $region78: #{tpu_custom_call.1} parent=55 // pred_check_branch
          %410 = sbr.rel (%p408) target = $region80
        $region79: #{tpu_custom_call.1} parent=55 // pred_region
          %411 = dma.done [#allocation12], 2048
        $region80: #{tpu_custom_call.1} parent=55 // pred_fallthru
          _
        // Predicated region
        $region81: #{tpu_custom_call.1} parent=55 // pred_check
          %p412 = pneg %p177
        $region82: #{tpu_custom_call.1} parent=55 // pred_check_branch
          %414 = sbr.rel (%p412) target = $region84
        $region83: #{tpu_custom_call.1} parent=55 // pred_region
          %415 = dma.done [#allocation12], 16
        $region84: #{tpu_custom_call.1} parent=55 // pred_fallthru
          _
        // Predicated region
        $region85: #{tpu_custom_call.1} parent=55 // pred_check
          %p416 = pneg %p198
        $region86: #{tpu_custom_call.1} parent=55 // pred_check_branch
          %418 = sbr.rel (%p416) target = $region88
        $region87: #{tpu_custom_call.1} parent=55 // pred_region
          %419 = dma.done [#allocation15], 2048
        $region88: #{tpu_custom_call.1} parent=55 // pred_fallthru
          _
        // Predicated region
        $region89: #{tpu_custom_call.1} parent=55 // pred_check
          %p420 = pneg %p219
        $region90: #{tpu_custom_call.1} parent=55 // pred_check_branch
          %422 = sbr.rel (%p420) target = $region92
        $region91: #{tpu_custom_call.1} parent=55 // pred_region
          %423 = dma.done [#allocation15], 16
        $region92: #{tpu_custom_call.1} parent=55 // pred_fallthru
          _
        %s424 = sand.u32 %s38, 1
        %s425 = scalar_lea.sflag [#allocation3], %s424
        %s426 = sand.u32 %s38, 1
        %s427 = smul.addr %s426, 8
        %s428 = scalar_lea.vmem [#allocation2], %s427
        %p429 = pneg %p51
        %p430 = pneg %p48
        %p431 = pneg %p72
        %p432 = pneg %p69
        %p433 = pneg %p93
        %p434 = pneg %p90
        %p435 = pneg %p114
        %p436 = pneg %p111
        %p437 = pneg %p135
        %p438 = pneg %p132
        %p439 = pneg %p156
        %p440 = pneg %p153
        %p441 = pneg %p177
        %p442 = pneg %p174
        %p443 = pneg %p198
        %p444 = pneg %p195
        %p445 = pneg %p219
        %p446 = pneg %p216
        %p447 = pneg %p245
        %p448 = pneg %p242
        %s449 = sand.u32 %s232, 1
        %s450 = scalar_lea.sflag [#allocation4], %s449
        %s451 = sand.u32 %s232, 1
        %s452 = smul.addr %s451, 8
        %s453 = scalar_lea.vmem [#allocation17], %s452
        %v454 = vld [vmem:[%s387] sm:$0xff]
        %v455 = vlaneseq
        %v456 = vand.u32 %v455, 127
        %vm457 = vcmp.lt.s32.totalorder %v456, 32
        %458 = vadd.xlane.f32.xlu0 %v454
        %v459 = vpop.xlane.xlu0 %458
        %v460 = vmul.f32 %v459, 0.03125
        %v461 = vsub.f32 %v454, %v460
        %v462 = vsel %vm457, 1, 0
        %vm463 = vcmp.eq.s32.totalorder %v462, 1
        %v464 = vsel %vm463, %v461, 0.0
        %v465 = vmul.f32 %v464, %v464
        %466 = vadd.xlane.f32.xlu0 %v465
        %v467 = vpop.xlane.xlu0 %466
        %v468 = vmul.f32 %v467, 0.03125
        %v469 = vadd.f32 %v468, 1e-05
        %v470 = vrsqrt.pop %v469
        %v471 = vmul.f32 %v464, %v470
        %v472 = vld [vmem:[#allocation5] sm:$0x1]
        %v474 = vlaneseq
        %v475 = vshrl.u32 %v474, 7
        %v476 = vsub.s32 0, %v475
        %v477 = vrot.slane %v472, %v476
        %v479 = vmul.f32 %v471, %v477
        %v480 = vld [vmem:[#allocation7] sm:$0x1]
        %v482 = vlaneseq
        %v483 = vshrl.u32 %v482, 7
        %v484 = vsub.s32 0, %v483
        %v485 = vrot.slane %v480, %v484
        %v487 = vadd.f32 %v479, %v485
        %v488 = vld [vmem:[#allocation8] sm:$0xff]
        %v489 = vld [vmem:[#allocation8 + $0x8] sm:$0xff]
        %v490 = vld [vmem:[#allocation8 + $0x10] sm:$0xff]
        %v491 = vld [vmem:[#allocation8 + $0x18] sm:$0xff]
        %v492 = vld [vmem:[#allocation8 + $0x20] sm:$0xff]
        %v493 = vld [vmem:[#allocation8 + $0x28] sm:$0xff]
        %v494 = vld [vmem:[#allocation8 + $0x30] sm:$0xff]
        %v495 = vld [vmem:[#allocation8 + $0x38] sm:$0xff]
        %v496 = vld [vmem:[#allocation8 + $0x40] sm:$0xff]
        %v497 = vld [vmem:[#allocation8 + $0x48] sm:$0xff]
        %v498 = vld [vmem:[#allocation8 + $0x50] sm:$0xff]
        %v499 = vld [vmem:[#allocation8 + $0x58] sm:$0xff]
        %v500 = vld [vmem:[#allocation8 + $0x60] sm:$0xff]
        %v501 = vld [vmem:[#allocation8 + $0x68] sm:$0xff]
        %v502 = vld [vmem:[#allocation8 + $0x70] sm:$0xff]
        %v503 = vld [vmem:[#allocation8 + $0x78] sm:$0xff]
        %v504 = vld [vmem:[#allocation10] sm:$0x1]
        %v506 = vlaneseq
        %v507 = vshrl.u32 %v506, 7
        %v508 = vsub.s32 0, %v507
        %v509 = vrot.slane %v504, %v508
        %511 = vmatprep.subr.mxu0 0.0
        %512 = vmatpush1.msra.mxu0 %v488
        %513 = vmatprep.subr.mxu0 0.0
        %514 = vmatpush1.msra.mxu0 %v489
        %515 = vmatprep.subr.mxu0 0.0
        %516 = vmatpush1.msra.mxu0 %v490
        %517 = vmatprep.subr.mxu0 0.0
        %518 = vmatpush1.msra.mxu0 %v491
        %519 = vmatprep.subr.mxu0 0.0
        %520 = vmatpush1.msra.mxu0 %v492
        %521 = vmatprep.subr.mxu0 0.0
        %522 = vmatpush1.msra.mxu0 %v493
        %523 = vmatprep.subr.mxu0 0.0
        %524 = vmatpush1.msra.mxu0 %v494
        %525 = vmatprep.subr.mxu0 0.0
        %526 = vmatpush1.msra.mxu0 %v495
        %527 = vmatprep.subr.mxu0 0.0
        %528 = vmatpush1.msra.mxu0 %v496
        %529 = vmatprep.subr.mxu0 0.0
        %530 = vmatpush1.msra.mxu0 %v497
        %531 = vmatprep.subr.mxu0 0.0
        %532 = vmatpush1.msra.mxu0 %v498
        %533 = vmatprep.subr.mxu0 0.0
        %534 = vmatpush1.msra.mxu0 %v499
        %535 = vmatprep.subr.mxu0 0.0
        %536 = vmatpush1.msra.mxu0 %v500
        %537 = vmatprep.subr.mxu0 0.0
        %538 = vmatpush1.msra.mxu0 %v501
        %539 = vmatprep.subr.mxu0 0.0
        %540 = vmatpush1.msra.mxu0 %v502
        %541 = vmatprep.subr.mxu0 0.0
        %542 = vmatpush1.msra.mxu0 %v503
        %543 = vmatprep.subr.mxu0 0.0
        %544 = vmatpush1.msra.mxu0 0.0
        %545 = vmatprep.subr.mxu0 0.0
        %546 = vmatpush1.msra.mxu0 0.0
        %547 = vmatprep.subr.mxu0 0.0
        %548 = vmatpush1.msra.mxu0 0.0
        %549 = vmatprep.subr.mxu0 0.0
        %550 = vmatpush1.msra.mxu0 0.0
        %551 = vmatprep.subr.mxu0 0.0
        %552 = vmatpush1.msra.mxu0 0.0
        %553 = vmatprep.subr.mxu0 0.0
        %554 = vmatpush1.msra.mxu0 0.0
        %555 = vmatprep.subr.mxu0 0.0
        %556 = vmatpush1.msra.mxu0 0.0
        %557 = vmatprep.subr.mxu0 0.0
        %558 = vmatpush1.msra.mxu0 0.0
        %559 = vmatprep.subr.mxu0 0.0
        %560 = vmatpush1.msra.mxu0 0.0
        %561 = vmatprep.subr.mxu0 0.0
        %562 = vmatpush1.msra.mxu0 0.0
        %563 = vmatprep.subr.mxu0 0.0
        %564 = vmatpush1.msra.mxu0 0.0
        %565 = vmatprep.subr.mxu0 0.0
        %566 = vmatpush1.msra.mxu0 0.0
        %567 = vmatprep.subr.mxu0 0.0
        %568 = vmatpush1.msra.mxu0 0.0
        %569 = vmatprep.subr.mxu0 0.0
        %570 = vmatpush1.msra.mxu0 0.0
        %571 = vmatprep.subr.mxu0 0.0
        %572 = vmatpush1.msra.mxu0 0.0
        %573 = vmatprep.subr.mxu0 0.0
        %574 = vmatpush1.msra.mxu0 0.0
        %575 = vmatprep.mubr.f32.mxu0 0.0
        %576 = vmatmul.mubr.f32.gmra.mrb[0].mxu0 %v487
        %v577 = vpop.f32.mrb[0].mxu0
        %v578 = vadd.f32 %v509, %v577
        %v579 = vpop.f32.mrb[0].mxu0
        %580 = vdwg.mxu0
        %v581 = vmax.f32 %v578, 0.0
        %v582 = vld [vmem:[#allocation11] sm:$0xff]
        %v583 = vld [vmem:[#allocation11 + $0x8] sm:$0xff]
        %v584 = vld [vmem:[#allocation11 + $0x10] sm:$0xff]
        %v585 = vld [vmem:[#allocation11 + $0x18] sm:$0xff]
        %v586 = vld [vmem:[#allocation11 + $0x20] sm:$0xff]
        %v587 = vld [vmem:[#allocation11 + $0x28] sm:$0xff]
        %v588 = vld [vmem:[#allocation11 + $0x30] sm:$0xff]
        %v589 = vld [vmem:[#allocation11 + $0x38] sm:$0xff]
        %v590 = vld [vmem:[#allocation11 + $0x40] sm:$0xff]
        %v591 = vld [vmem:[#allocation11 + $0x48] sm:$0xff]
        %v592 = vld [vmem:[#allocation11 + $0x50] sm:$0xff]
        %v593 = vld [vmem:[#allocation11 + $0x58] sm:$0xff]
        %v594 = vld [vmem:[#allocation11 + $0x60] sm:$0xff]
        %v595 = vld [vmem:[#allocation11 + $0x68] sm:$0xff]
        %v596 = vld [vmem:[#allocation11 + $0x70] sm:$0xff]
        %v597 = vld [vmem:[#allocation11 + $0x78] sm:$0xff]
        %v598 = vld [vmem:[#allocation13] sm:$0x1]
        %v600 = vlaneseq
        %v601 = vshrl.u32 %v600, 7
        %v602 = vsub.s32 0, %v601
        %v603 = vrot.slane %v598, %v602
        %605 = vmatprep.subr.mxu0 0.0
        %606 = vmatpush1.msra.mxu0 %v582
        %607 = vmatprep.subr.mxu0 0.0
        %608 = vmatpush1.msra.mxu0 %v583
        %609 = vmatprep.subr.mxu0 0.0
        %610 = vmatpush1.msra.mxu0 %v584
        %611 = vmatprep.subr.mxu0 0.0
        %612 = vmatpush1.msra.mxu0 %v585
        %613 = vmatprep.subr.mxu0 0.0
        %614 = vmatpush1.msra.mxu0 %v586
        %615 = vmatprep.subr.mxu0 0.0
        %616 = vmatpush1.msra.mxu0 %v587
        %617 = vmatprep.subr.mxu0 0.0
        %618 = vmatpush1.msra.mxu0 %v588
        %619 = vmatprep.subr.mxu0 0.0
        %620 = vmatpush1.msra.mxu0 %v589
        %621 = vmatprep.subr.mxu0 0.0
        %622 = vmatpush1.msra.mxu0 %v590
        %623 = vmatprep.subr.mxu0 0.0
        %624 = vmatpush1.msra.mxu0 %v591
        %625 = vmatprep.subr.mxu0 0.0
        %626 = vmatpush1.msra.mxu0 %v592
        %627 = vmatprep.subr.mxu0 0.0
        %628 = vmatpush1.msra.mxu0 %v593
        %629 = vmatprep.subr.mxu0 0.0
        %630 = vmatpush1.msra.mxu0 %v594
        %631 = vmatprep.subr.mxu0 0.0
        %632 = vmatpush1.msra.mxu0 %v595
        %633 = vmatprep.subr.mxu0 0.0
        %634 = vmatpush1.msra.mxu0 %v596
        %635 = vmatprep.subr.mxu0 0.0
        %636 = vmatpush1.msra.mxu0 %v597
        %637 = vmatprep.subr.mxu0 0.0
        %638 = vmatpush1.msra.mxu0 0.0
        %639 = vmatprep.subr.mxu0 0.0
        %640 = vmatpush1.msra.mxu0 0.0
        %641 = vmatprep.subr.mxu0 0.0
        %642 = vmatpush1.msra.mxu0 0.0
        %643 = vmatprep.subr.mxu0 0.0
        %644 = vmatpush1.msra.mxu0 0.0
        %645 = vmatprep.subr.mxu0 0.0
        %646 = vmatpush1.msra.mxu0 0.0
        %647 = vmatprep.subr.mxu0 0.0
        %648 = vmatpush1.msra.mxu0 0.0
        %649 = vmatprep.subr.mxu0 0.0
        %650 = vmatpush1.msra.mxu0 0.0
        %651 = vmatprep.subr.mxu0 0.0
        %652 = vmatpush1.msra.mxu0 0.0
        %653 = vmatprep.subr.mxu0 0.0
        %654 = vmatpush1.msra.mxu0 0.0
        %655 = vmatprep.subr.mxu0 0.0
        %656 = vmatpush1.msra.mxu0 0.0
        %657 = vmatprep.subr.mxu0 0.0
        %658 = vmatpush1.msra.mxu0 0.0
        %659 = vmatprep.subr.mxu0 0.0
        %660 = vmatpush1.msra.mxu0 0.0
        %661 = vmatprep.subr.mxu0 0.0
        %662 = vmatpush1.msra.mxu0 0.0
        %663 = vmatprep.subr.mxu0 0.0
        %664 = vmatpush1.msra.mxu0 0.0
        %665 = vmatprep.subr.mxu0 0.0
        %666 = vmatpush1.msra.mxu0 0.0
        %667 = vmatprep.subr.mxu0 0.0
        %668 = vmatpush1.msra.mxu0 0.0
        %669 = vmatprep.mubr.f32.mxu0 0.0
        %670 = vmatmul.mubr.f32.gmra.mrb[0].mxu0 %v581
        %v671 = vpop.f32.mrb[0].mxu0
        %v672 = vadd.f32 %v603, %v671
        %v673 = vpop.f32.mrb[0].mxu0
        %674 = vdwg.mxu0
        %v675 = vmax.f32 %v672, 0.0
        %v676 = vld [vmem:[#allocation14] sm:$0xff]
        %v677 = vld [vmem:[#allocation14 + $0x8] sm:$0xff]
        %v678 = vld [vmem:[#allocation14 + $0x10] sm:$0xff]
        %v679 = vld [vmem:[#allocation14 + $0x18] sm:$0xff]
        %v680 = vld [vmem:[#allocation14 + $0x20] sm:$0xff]
        %v681 = vld [vmem:[#allocation14 + $0x28] sm:$0xff]
        %v682 = vld [vmem:[#allocation14 + $0x30] sm:$0xff]
        %v683 = vld [vmem:[#allocation14 + $0x38] sm:$0xff]
        %v684 = vld [vmem:[#allocation14 + $0x40] sm:$0xff]
        %v685 = vld [vmem:[#allocation14 + $0x48] sm:$0xff]
        %v686 = vld [vmem:[#allocation14 + $0x50] sm:$0xff]
        %v687 = vld [vmem:[#allocation14 + $0x58] sm:$0xff]
        %v688 = vld [vmem:[#allocation14 + $0x60] sm:$0xff]
        %v689 = vld [vmem:[#allocation14 + $0x68] sm:$0xff]
        %v690 = vld [vmem:[#allocation14 + $0x70] sm:$0xff]
        %v691 = vld [vmem:[#allocation14 + $0x78] sm:$0xff]
        %v692 = vld [vmem:[#allocation16] sm:$0x1]
        %v694 = vlaneseq
        %v695 = vshrl.u32 %v694, 7
        %v696 = vsub.s32 0, %v695
        %v697 = vrot.slane %v692, %v696
        %699 = vmatprep.subr.mxu0 0.0
        %700 = vmatpush1.msra.mxu0 %v676
        %701 = vmatprep.subr.mxu0 0.0
        %702 = vmatpush1.msra.mxu0 %v677
        %703 = vmatprep.subr.mxu0 0.0
        %704 = vmatpush1.msra.mxu0 %v678
        %705 = vmatprep.subr.mxu0 0.0
        %706 = vmatpush1.msra.mxu0 %v679
        %707 = vmatprep.subr.mxu0 0.0
        %708 = vmatpush1.msra.mxu0 %v680
        %709 = vmatprep.subr.mxu0 0.0
        %710 = vmatpush1.msra.mxu0 %v681
        %711 = vmatprep.subr.mxu0 0.0
        %712 = vmatpush1.msra.mxu0 %v682
        %713 = vmatprep.subr.mxu0 0.0
        %714 = vmatpush1.msra.mxu0 %v683
        %715 = vmatprep.subr.mxu0 0.0
        %716 = vmatpush1.msra.mxu0 %v684
        %717 = vmatprep.subr.mxu0 0.0
        %718 = vmatpush1.msra.mxu0 %v685
        %719 = vmatprep.subr.mxu0 0.0
        %720 = vmatpush1.msra.mxu0 %v686
        %721 = vmatprep.subr.mxu0 0.0
        %722 = vmatpush1.msra.mxu0 %v687
        %723 = vmatprep.subr.mxu0 0.0
        %724 = vmatpush1.msra.mxu0 %v688
        %725 = vmatprep.subr.mxu0 0.0
        %726 = vmatpush1.msra.mxu0 %v689
        %727 = vmatprep.subr.mxu0 0.0
        %728 = vmatpush1.msra.mxu0 %v690
        %729 = vmatprep.subr.mxu0 0.0
        %730 = vmatpush1.msra.mxu0 %v691
        %731 = vmatprep.subr.mxu0 0.0
        %732 = vmatpush1.msra.mxu0 0.0
        %733 = vmatprep.subr.mxu0 0.0
        %734 = vmatpush1.msra.mxu0 0.0
        %735 = vmatprep.subr.mxu0 0.0
        %736 = vmatpush1.msra.mxu0 0.0
        %737 = vmatprep.subr.mxu0 0.0
        %738 = vmatpush1.msra.mxu0 0.0
        %739 = vmatprep.subr.mxu0 0.0
        %740 = vmatpush1.msra.mxu0 0.0
        %741 = vmatprep.subr.mxu0 0.0
        %742 = vmatpush1.msra.mxu0 0.0
        %743 = vmatprep.subr.mxu0 0.0
        %744 = vmatpush1.msra.mxu0 0.0
        %745 = vmatprep.subr.mxu0 0.0
        %746 = vmatpush1.msra.mxu0 0.0
        %747 = vmatprep.subr.mxu0 0.0
        %748 = vmatpush1.msra.mxu0 0.0
        %749 = vmatprep.subr.mxu0 0.0
        %750 = vmatpush1.msra.mxu0 0.0
        %751 = vmatprep.subr.mxu0 0.0
        %752 = vmatpush1.msra.mxu0 0.0
        %753 = vmatprep.subr.mxu0 0.0
        %754 = vmatpush1.msra.mxu0 0.0
        %755 = vmatprep.subr.mxu0 0.0
        %756 = vmatpush1.msra.mxu0 0.0
        %757 = vmatprep.subr.mxu0 0.0
        %758 = vmatpush1.msra.mxu0 0.0
        %759 = vmatprep.subr.mxu0 0.0
        %760 = vmatpush1.msra.mxu0 0.0
        %761 = vmatprep.subr.mxu0 0.0
        %762 = vmatpush1.msra.mxu0 0.0
        %763 = vmatprep.mubr.f32.mxu0 0.0
        %764 = vmatmul.mubr.f32.gmra.mrb[0].mxu0 %v675
        %v765 = vpop.f32.mrb[0].mxu0
        %v766 = vadd.f32 %v697, %v765
        %v767 = vpop.f32.mrb[0].mxu0
        %768 = vdwg.mxu0
        %769 = vst [vmem:[%s453] sm:$0xff] %v766
        %s770 = sand.u32 %s232, 1
        %s771 = scalar_lea.sflag [#allocation4], %s770
        %s772 = sand.u32 %s232, 1
        %s773 = smul.addr %s772, 8
        %s774 = scalar_lea.vmem [#allocation17], %s773
        // Predicated region
        $region93: #{tpu_custom_call.1} parent=55 // pred_check
          %p775 = pneg %p242
        $region94: #{tpu_custom_call.1} parent=55 // pred_check_branch
          %777 = sbr.rel (%p775) target = $region96
        $region95: #{tpu_custom_call.1} parent=55 // pred_region
          %s779 = ssub.s32 128, 128
          %780 = vsyncadd %s771, %s779
          %s781 = smul.addr %s30, 128
          %s782 = scalar_lea.hbm %s9, %s781
          %s784 = sshll.u32 %s774, 4
          %s785 = int_to_ptr.vmem [resolvable:$true] %s784
          %787 = dma.vmem_to_hbm [thread:$0]  %s785, 128, %s782, %s771
        $region96: #{tpu_custom_call.1} parent=55 // pred_fallthru
          _
      $region56: #{tpu_custom_call.1} parent=5 // pred_fallthru
        _
      %p788 = scmp.le.s32.totalorder 2, %s25
      // Predicated region
      $region97: #{tpu_custom_call.1} parent=5 // pred_check
        %p789 = pneg %p788
      $region98: #{tpu_custom_call.1} parent=5 // pred_check_branch
        %791 = sbr.rel (%p789) target = $region100
      $region99: #{tpu_custom_call.1} parent=5 // pred_region
        %s792 = ssub.s32 %s25, 2
        // Predicated region
        $region101: #{tpu_custom_call.1} parent=99 // pred_check
          %p793 = pneg %p248
        $region102: #{tpu_custom_call.1} parent=99 // pred_check_branch
          %795 = sbr.rel (%p793) target = $region104
        $region103: #{tpu_custom_call.1} parent=99 // pred_region
          %s796 = sand.u32 %s233, 1
          %s797 = scalar_lea.sflag [#allocation4], %s796
          %s798 = sand.u32 %s233, 1
          %s799 = smul.addr %s798, 8
          %s800 = scalar_lea.vmem [#allocation17], %s799
          %801 = dma.done %s797, 128
        $region104: #{tpu_custom_call.1} parent=99 // pred_fallthru
          _
      $region100: #{tpu_custom_call.1} parent=5 // pred_fallthru
        _
    $region6: #{tpu_custom_call.1} parent=1 // loop_footer
      %s29 = sadd.s32 1, %s25
    $region7: #{tpu_custom_call.1} parent=1 // loop_footer_branch
      %24 = sbr.rel target = $region3
    $region8: #{tpu_custom_call.1} parent=1 // loop_exit
      _
    %802 = vsyncpa [#allocation3], 1
    %s803 = scalar_lea.sflag [#allocation3], 1
    %804 = vsyncpa %s803, 1
    %805 = vsyncpa [#allocation6], 1
    %806 = vsyncpa [#allocation9], 1
    %807 = vsyncpa [#allocation12], 1
    %808 = vsyncpa [#allocation15], 1
    %809 = vsyncpa [#allocation4], 1
    %s810 = scalar_lea.sflag [#allocation4], 1
    %811 = vsyncpa %s810, 1

</llo_original>
